<compile_context>
chip_gen: v7x
topology: tpu7x:2x2x1
jax: 0.10.0
libtpu: 0.0.40
codegen_flags: <defaults>
</compile_context>

<pallas_src>
import jax
import jax.numpy as jnp
from jax.experimental import pallas as pl
from jax.experimental.pallas import tpu as pltpu

LN_EPS = 1e-5


# ---------------------------------------------------------------------------
# Tiling helpers
# ---------------------------------------------------------------------------
def _align_up(n, m):
    return -(-n // m) * m


def _tpu_caps():
    """Return (physical VMEM bytes per core, TensorCores assumed to share the grid)."""
    phys = 64 * 1024 * 1024  # conservative default (v7x per-TC)
    try:
        phys = int(pltpu.get_tpu_info().vmem_capacity_bytes)
    except Exception:
        pass
    # v7x-class parts (64 MiB VMEM per TC) have 2 TensorCores sharing "parallel" grid axes.
    cores = 2 if phys <= 64 * 1024 * 1024 else 1
    return phys, cores


def _row_tile(R, tile_rows, row_align, cores):
    """Clamp an auto-sized row tile: sublane-aligned, and >= 2 tiles on multi-core chips."""
    if cores >= 2 and R > row_align:
        tile_rows = min(tile_rows, _align_up(-(-R // cores), row_align))
    if tile_rows >= R:
        return R  # single full-extent block (always a legal block shape)
    return max(row_align, (tile_rows // row_align) * row_align)


# ---------------------------------------------------------------------------
# Kernel 1: epilogue-only (residual + a*sub_out + LayerNorm)
# ---------------------------------------------------------------------------
def _sublayer_connection_kernel(a_ref, x_ref, s_ref, gamma_ref, beta_ref, o_ref):
    # a_ref:     SMEM (1,) f32            -- residual scale parameter `a`
    # x_ref:     VMEM (TILE_R, H) io-dt   -- residual input rows
    # s_ref:     VMEM (TILE_R, H) io-dt   -- sublayer(x) output rows
    # gamma_ref: VMEM (1, H) f32          -- LayerNorm weight
    # beta_ref:  VMEM (1, H) f32          -- LayerNorm bias
    # o_ref:     VMEM (TILE_R, H) io-dt   -- output rows
    a = a_ref[0]
    y = x_ref[...].astype(jnp.float32) + a * s_ref[...].astype(jnp.float32)
    inv_h = jnp.float32(1.0 / y.shape[-1])
    mean = jnp.sum(y, axis=-1, keepdims=True) * inv_h
    var = jnp.maximum(jnp.sum(y * y, axis=-1, keepdims=True) * inv_h - mean * mean, 0.0)
    inv = jax.lax.rsqrt(var + LN_EPS)
    o_ref[...] = ((y - mean) * inv * gamma_ref[...] + beta_ref[...]).astype(o_ref.dtype)


def sublayer_connection(x, sub_out, gamma, beta, a, *, tile_rows=None):
    """out = LayerNorm(x + a * sub_out) over the last axis (sub_out computed outside)."""
    orig_shape = x.shape
    H = orig_shape[-1]
    x2 = x.reshape(-1, H)
    s2 = sub_out.reshape(-1, H)
    R = x2.shape[0]

    io_bytes = jnp.dtype(x.dtype).itemsize
    row_align = 8 if io_bytes >= 4 else 16  # sublane packing (f32: 8, bf16: 16)
    phys, cores = _tpu_caps()
    budget = phys * 3 // 4

    if tile_rows is None:
        # 3 pipelined arrays (x, sub_out, out), double-buffered, at IO dtype.
        per_row = 3 * 2 * H * io_bytes
        tile_rows = max(row_align, int(budget // max(per_row, 1)))
    tile_rows = _row_tile(R, min(tile_rows, 1024), row_align, cores)
    n_tiles = -(-R // tile_rows)  # ragged tail handled by Pallas edge blocks (row-wise LN)

    gamma2 = gamma.reshape(1, H).astype(jnp.float32)
    beta2 = beta.reshape(1, H).astype(jnp.float32)
    a1 = jnp.asarray(a, jnp.float32).reshape(1)

    out = pl.pallas_call(
        _sublayer_connection_kernel,
        out_shape=jax.ShapeDtypeStruct((R, H), x.dtype),
        grid_spec=pltpu.PrefetchScalarGridSpec(
            num_scalar_prefetch=0,
            grid=(n_tiles,),
            in_specs=[
                pl.BlockSpec(memory_space=pltpu.SMEM),            # a (scalar)
                pl.BlockSpec((tile_rows, H), lambda i: (i, 0)),   # x rows
                pl.BlockSpec((tile_rows, H), lambda i: (i, 0)),   # sublayer(x) rows
                pl.BlockSpec((1, H), lambda i: (0, 0)),           # gamma (resident)
                pl.BlockSpec((1, H), lambda i: (0, 0)),           # beta  (resident)
            ],
            out_specs=pl.BlockSpec((tile_rows, H), lambda i: (i, 0)),
        ),
        compiler_params=pltpu.CompilerParams(
            dimension_semantics=("parallel",),
            vmem_limit_bytes=int(budget)),
    )(a1, x2, s2, gamma2, beta2)
    return out.reshape(orig_shape)


# ---------------------------------------------------------------------------
# Kernel 2: fully fused dense sublayer (x @ w) + residual + LayerNorm
# ---------------------------------------------------------------------------
def _fused_dense_kernel(a_ref, x_ref, w_ref, gamma_ref, beta_ref, o_ref, acc_ref):
    k = pl.program_id(1)
    tile_k = w_ref.shape[0]

    # Matmul LHS comes from the already-resident residual block (K == H): x is read once.
    start = k * tile_k
    if tile_k % 128 == 0:
        start = pl.multiple_of(start, 128)
    lhs = x_ref[:, pl.ds(start, tile_k)]
    if lhs.dtype != w_ref.dtype:
        lhs = lhs.astype(w_ref.dtype)  # bf16 MXU operands; f32 accumulation below
    part = jnp.dot(lhs, w_ref[...], preferred_element_type=jnp.float32)

    @pl.when(k == 0)
    def _():
        acc_ref[...] = part            # direct store: no zero-init + '+=' pass

    @pl.when(k > 0)
    def _():
        acc_ref[...] += part

    @pl.when(k == pl.num_programs(1) - 1)
    def _():
        a = a_ref[0]
        y = x_ref[...].astype(jnp.float32) + a * acc_ref[...]
        inv_h = jnp.float32(1.0 / y.shape[-1])
        mean = jnp.sum(y, axis=-1, keepdims=True) * inv_h
        var = jnp.maximum(jnp.sum(y * y, axis=-1, keepdims=True) * inv_h - mean * mean, 0.0)
        inv = jax.lax.rsqrt(var + LN_EPS)
        o_ref[...] = ((y - mean) * inv * gamma_ref[...] + beta_ref[...]).astype(o_ref.dtype)


def sublayer_connection_dense(x, w, gamma, beta, a, *, tile_rows=None, tile_k=None,
                              matmul_dtype=jnp.bfloat16):
    """out = LayerNorm(x + a * (x @ w)); matmul fused on-MXU, no sub_out HBM roundtrip."""
    orig_shape = x.shape
    H = orig_shape[-1]
    K, N = w.shape
    assert K == H and N == H, "dense sublayer must map last dim -> last dim (size)"
    x2 = x.reshape(-1, H)
    R = x2.shape[0]

    # MXU operand dtype: bf16 by default (accuracy-neutral under the following LayerNorm);
    # pass matmul_dtype=None for full-precision operands.
    w_mxu = w if matmul_dtype is None else w.astype(matmul_dtype)
    wb = jnp.dtype(w_mxu.dtype).itemsize
    io_bytes = jnp.dtype(x.dtype).itemsize
    row_align = 8 if io_bytes >= 4 else 16
    phys, cores = _tpu_caps()
    budget = phys * 3 // 4

    def rows_for(tk, resident_w):
        fixed = (1 if resident_w else 2) * tk * H * wb + 2 * H * 4       # w buffers, gamma/beta
        per_row = 4 * H * io_bytes + H * 4 + H * wb                      # x+out dbl-buf, f32 acc, lhs cast
        return max(row_align, int((budget - fixed) // per_row))

    if tile_k is None:
        if K * H * wb <= budget // 3:
            tile_k = K                                   # whole weight resident: one HBM read
        else:
            cands = [c for c in (512, 256, 128) if K % c == 0] or [K]
            tile_k = cands[-1]
            for c in cands:                              # largest tile_k keeping M tile >= 256
                if rows_for(c, False) >= 256:
                    tile_k = c
                    break
    if K % tile_k != 0:
        tile_k = K        # never let a partial K block pollute the reduction
    if tile_rows is None:
        tile_rows = rows_for(tile_k, tile_k == K)
    tile_rows = _row_tile(R, min(tile_rows, 1024), row_align, cores)

    n_row_tiles = -(-R // tile_rows)
    n_k = K // tile_k

    gamma2 = gamma.reshape(1, H).astype(jnp.float32)
    beta2 = beta.reshape(1, H).astype(jnp.float32)
    a1 = jnp.asarray(a, jnp.float32).reshape(1)

    out = pl.pallas_call(
        _fused_dense_kernel,
        out_shape=jax.ShapeDtypeStruct((R, H), x.dtype),
        grid_spec=pltpu.PrefetchScalarGridSpec(
            num_scalar_prefetch=0,
            grid=(n_row_tiles, n_k),
            in_specs=[
                pl.BlockSpec(memory_space=pltpu.SMEM),                 # a (scalar)
                pl.BlockSpec((tile_rows, H), lambda i, k: (i, 0)),     # x rows (residual + LHS)
                pl.BlockSpec((tile_k, H), lambda i, k: (k, 0)),        # w (resident when n_k == 1)
                pl.BlockSpec((1, H), lambda i, k: (0, 0)),             # gamma
                pl.BlockSpec((1, H), lambda i, k: (0, 0)),             # beta
            ],
            out_specs=pl.BlockSpec((tile_rows, H), lambda i, k: (i, 0)),
            scratch_shapes=[pltpu.VMEM((tile_rows, H), jnp.float32)],
        ),
        compiler_params=pltpu.CompilerParams(
            dimension_semantics=("parallel", "arbitrary"),
            vmem_limit_bytes=int(budget)),
    )(a1, x2, w_mxu, gamma2, beta2)
    return out.reshape(orig_shape)


# ---------------------------------------------------------------------------
# Reference + demo
# ---------------------------------------------------------------------------
def reference(x, sub_out, gamma, beta, a):
    y = x.astype(jnp.float32) + jnp.float32(a) * sub_out.astype(jnp.float32)
    mean = jnp.mean(y, axis=-1, keepdims=True)
    var = jnp.mean((y - mean) ** 2, axis=-1, keepdims=True)
    return (y - mean) * jax.lax.rsqrt(var + LN_EPS) * gamma + beta


if __name__ == "__main__":
    key = jax.random.PRNGKey(0)
    B, S, H = 2, 8, 128  # batch, seq, hidden (= LayerNorm `size`; lane-dense multiple of 128)

    k1, k2, k3, k4 = jax.random.split(key, 4)
    x = jax.random.normal(k1, (B, S, H), dtype=jnp.float32)
    gamma = 1.0 + 0.1 * jax.random.normal(k3, (H,), dtype=jnp.float32)
    beta = 0.1 * jax.random.normal(k4, (H,), dtype=jnp.float32)
    a = jnp.float32(1e-8)  # enable_res_parameter init value

    # Example "sublayer": a dense map over the last dim.
    w_sub = jax.random.normal(k2, (H, H), dtype=jnp.float32) * 0.02
    sub_out = x @ w_sub

    # 1) Generic path: arbitrary sublayer output, fused residual + a-scale + LayerNorm.
    out1 = sublayer_connection(x, sub_out, gamma, beta, a)
    jax.block_until_ready(out1)
    ref1 = reference(x, sub_out, gamma, beta, a)
    assert jnp.allclose(out1, ref1, atol=1e-4, rtol=1e-4), "epilogue kernel mismatch"

    # 2) Fully fused dense path, full-precision MXU operands (exact check, nontrivial `a`).
    a2 = jnp.float32(0.37)
    out2 = sublayer_connection_dense(x, w_sub, gamma, beta, a2, matmul_dtype=None)
    jax.block_until_ready(out2)
    ref2 = reference(x, sub_out, gamma, beta, a2)
    assert jnp.allclose(out2, ref2, atol=1e-4, rtol=1e-4), "fused dense (f32) mismatch"

    # 3) Fused dense path with default bf16 MXU operands (f32 accumulation).
    out3 = sublayer_connection_dense(x, w_sub, gamma, beta, a2)
    jax.block_until_ready(out3)
    assert jnp.allclose(out3, ref2, atol=2e-2, rtol=2e-2), "fused dense (bf16 MXU) mismatch"

    # 4) bf16 I/O on the bandwidth-bound epilogue path (halves HBM traffic).
    xb = x.astype(jnp.bfloat16)
    sb = sub_out.astype(jnp.bfloat16)
    out4 = sublayer_connection(xb, sb, gamma, beta, a2)
    jax.block_until_ready(out4)
    ref4 = reference(xb.astype(jnp.float32), sb.astype(jnp.float32), gamma, beta, a2)
    assert jnp.allclose(out4.astype(jnp.float32), ref4, atol=5e-2, rtol=5e-2), "bf16 mismatch"

    # 5) Ragged row count: exercises the pad-free cdiv edge-block path (no jnp.pad anywhere).
    x5 = x.reshape(-1, H)[:11]
    s5 = sub_out.reshape(-1, H)[:11]
    out5 = sublayer_connection(x5, s5, gamma, beta, a2, tile_rows=8)
    jax.block_until_ready(out5)
    ref5 = reference(x5, s5, gamma, beta, a2)
    assert jnp.allclose(out5, ref5, atol=1e-4, rtol=1e-4), "ragged-rows mismatch"

    print("KERNEL_OK")
</pallas_src>

<mosaic_0001>
module attributes {stable_mosaic.version = 11 : i64} {
  func.func @_sublayer_connection_kernel(%arg0: i32, %arg1: memref<1xf32, #tpu.memory_space<smem>>, %arg2: memref<8x128xf32, #tpu.memory_space<vmem>>, %arg3: memref<8x128xf32, #tpu.memory_space<vmem>>, %arg4: memref<1x128xf32, #tpu.memory_space<vmem>>, %arg5: memref<1x128xf32, #tpu.memory_space<vmem>>, %arg6: memref<8x128xf32, #tpu.memory_space<vmem>>) attributes {dimension_semantics = [#tpu.dimension_semantics<parallel>], iteration_bounds = array<i64: 2>, scalar_prefetch = 0 : i64, scratch_operands = 0 : i64, tpu.core_type = #tpu.core_type<tc>, window_params = [{transform_indices = @transform_0, window_bounds = array<i64: 1>}, {transform_indices = @transform_1, window_bounds = array<i64: 8, 128>}, {transform_indices = @transform_2, window_bounds = array<i64: 8, 128>}, {pipeline_mode = #tpu.pipeline_mode<synchronous>, transform_indices = @transform_3, window_bounds = array<i64: 1, 128>}, {pipeline_mode = #tpu.pipeline_mode<synchronous>, transform_indices = @transform_4, window_bounds = array<i64: 1, 128>}, {transform_indices = @transform_5, window_bounds = array<i64: 8, 128>}]} {
    %c0 = arith.constant 0 : index
    %0 = memref.load %arg1[%c0] : memref<1xf32, #tpu.memory_space<smem>>
    %c0_0 = arith.constant 0 : index
    %c0_1 = arith.constant 0 : index
    %1 = vector.load %arg2[%c0_0, %c0_1] : memref<8x128xf32, #tpu.memory_space<vmem>>, vector<8x128xf32>
    %c0_2 = arith.constant 0 : index
    %c0_3 = arith.constant 0 : index
    %2 = vector.load %arg3[%c0_2, %c0_3] : memref<8x128xf32, #tpu.memory_space<vmem>>, vector<8x128xf32>
    %3 = vector.broadcast %0 : f32 to vector<8x128xf32>
    %4 = arith.mulf %3, %2 : vector<8x128xf32>
    %5 = arith.addf %1, %4 : vector<8x128xf32>
    %cst = arith.constant dense<0.000000e+00> : vector<8xf32>
    %6 = vector.multi_reduction <add>, %5, %cst [1] : vector<8x128xf32> to vector<8xf32>
    %7 = vector.shape_cast %6 : vector<8xf32> to vector<8x1xf32>
    %cst_4 = arith.constant 7.812500e-03 : f32
    %8 = vector.broadcast %cst_4 : f32 to vector<8x1xf32>
    %9 = arith.mulf %7, %8 : vector<8x1xf32>
    %10 = arith.mulf %5, %5 : vector<8x128xf32>
    %cst_5 = arith.constant dense<0.000000e+00> : vector<8xf32>
    %11 = vector.multi_reduction <add>, %10, %cst_5 [1] : vector<8x128xf32> to vector<8xf32>
    %12 = vector.shape_cast %11 : vector<8xf32> to vector<8x1xf32>
    %cst_6 = arith.constant 7.812500e-03 : f32
    %13 = vector.broadcast %cst_6 : f32 to vector<8x1xf32>
    %14 = arith.mulf %12, %13 : vector<8x1xf32>
    %15 = arith.mulf %9, %9 : vector<8x1xf32>
    %16 = arith.subf %14, %15 : vector<8x1xf32>
    %cst_7 = arith.constant 0.000000e+00 : f32
    %17 = vector.broadcast %cst_7 : f32 to vector<8x1xf32>
    %18 = arith.maximumf %16, %17 : vector<8x1xf32>
    %cst_8 = arith.constant 9.99999974E-6 : f32
    %19 = vector.broadcast %cst_8 : f32 to vector<8x1xf32>
    %20 = arith.addf %18, %19 : vector<8x1xf32>
    %21 = math.rsqrt %20 : vector<8x1xf32>
    %22 = vector.broadcast %9 : vector<8x1xf32> to vector<8x128xf32>
    %23 = arith.subf %5, %22 : vector<8x128xf32>
    %24 = vector.broadcast %21 : vector<8x1xf32> to vector<8x128xf32>
    %25 = arith.mulf %23, %24 : vector<8x128xf32>
    %c0_9 = arith.constant 0 : index
    %c0_10 = arith.constant 0 : index
    %26 = vector.load %arg4[%c0_9, %c0_10] : memref<1x128xf32, #tpu.memory_space<vmem>>, vector<1x128xf32>
    %27 = vector.broadcast %26 : vector<1x128xf32> to vector<8x128xf32>
    %28 = arith.mulf %25, %27 : vector<8x128xf32>
    %c0_11 = arith.constant 0 : index
    %c0_12 = arith.constant 0 : index
    %29 = vector.load %arg5[%c0_11, %c0_12] : memref<1x128xf32, #tpu.memory_space<vmem>>, vector<1x128xf32>
    %30 = vector.broadcast %29 : vector<1x128xf32> to vector<8x128xf32>
    %31 = arith.addf %28, %30 : vector<8x128xf32>
    %c0_13 = arith.constant 0 : index
    %c0_14 = arith.constant 0 : index
    %32 = vector.load %arg6[%c0_13, %c0_14] : memref<8x128xf32, #tpu.memory_space<vmem>>, vector<8x128xf32>
    tpu.vector_store %arg6[%c0_13, %c0_14], %31 {strides = array<i32>} : memref<8x128xf32, #tpu.memory_space<vmem>>, vector<8x128xf32>,
    return
  }
  func.func @transform_0(%arg0: i32) -> i32 {
    %c0_i32 = arith.constant 0 : i32
    %c0_i32_0 = arith.constant 0 : i32
    return %c0_i32 : i32
  }
  func.func @transform_1(%arg0: i32) -> (i32, i32) {
    %c0_i32 = arith.constant 0 : i32
    %c0_i32_0 = arith.constant 0 : i32
    return %arg0, %c0_i32 : i32, i32
  }
  func.func @transform_2(%arg0: i32) -> (i32, i32) {
    %c0_i32 = arith.constant 0 : i32
    %c0_i32_0 = arith.constant 0 : i32
    return %arg0, %c0_i32 : i32, i32
  }
  func.func @transform_3(%arg0: i32) -> (i32, i32) {
    %c0_i32 = arith.constant 0 : i32
    %c0_i32_0 = arith.constant 0 : i32
    %c0_i32_1 = arith.constant 0 : i32
    return %c0_i32, %c0_i32_0 : i32, i32
  }
  func.func @transform_4(%arg0: i32) -> (i32, i32) {
    %c0_i32 = arith.constant 0 : i32
    %c0_i32_0 = arith.constant 0 : i32
    %c0_i32_1 = arith.constant 0 : i32
    return %c0_i32, %c0_i32_0 : i32, i32
  }
  func.func @transform_5(%arg0: i32) -> (i32, i32) {
    %c0_i32 = arith.constant 0 : i32
    %c0_i32_0 = arith.constant 0 : i32
    return %arg0, %c0_i32 : i32, i32
  }
}

</mosaic_0001>

<llo_original>
// kernel: tpu_custom_call.1
$region0: #{tpu_custom_call.1}
  #allocation0 [shape = 'u32[]', space=smem, size = 0x4, offset = 0x4, fixed_abs, tag = 'smem constant byte address 0x4 - core index']
  #allocation1 [shape = 'u32[144,128]{1,0:T(1,128)}', space=vmem, size = 0x12000, scoped, tag = 'internal scratch']
  #allocation2 [shape = 'f32[1]{0:T(128)S(6)}', space=smem, size = 0x200, scoped, tag = 'scoped memory for tpu_custom_call.1']
  %s0 = inlined_call_operand.<no memory space> [shape: f32[1], index: 0, kind: input, shape index: {}]
  %s1 = inlined_call_operand.hbm [shape: f32[16,128], index: 1, kind: input, shape index: {}]
  %s2 = inlined_call_operand.hbm [shape: f32[16,128], index: 2, kind: input, shape index: {}]
  %s3 = inlined_call_operand.vmem [shape: f32[1,128], index: 3, kind: input, shape index: {}]
  %s4 = inlined_call_operand.vmem [shape: f32[1,128], index: 4, kind: input, shape index: {}]
  %s5 = inlined_call_operand.hbm [shape: f32[16,128], index: 5, kind: output, shape index: {}]
  %s6 = sld [smem:[#allocation0]]
  $region61: #{tpu_custom_call.1} parent=0
    _
  %s8 = ssub.s32 1, %s6
  %s9 = scalar_select 0, %s8, %s6
  %10 = sst [smem:[#allocation2]] %s0
  $region1: #{tpu_custom_call.1} parent=0
    #allocation3 [shape = 'u8[8192]{0}', space=vmem, size = 0x2000, scoped, tag = 'input window, operand 1']
    #allocation4 [shape = 's32[2]{0}', space=sflag, size = 0x8, scoped, tag = 'scoped memory for tpu_custom_call.1']
    #allocation5 [shape = 's32[2]{0}', space=sflag, size = 0x8, scoped, tag = 'scoped memory for tpu_custom_call.1']
    #allocation6 [shape = 'u8[8192]{0}', space=vmem, size = 0x2000, scoped, tag = 'input window, operand 2']
    #allocation7 [shape = 's32[2]{0}', space=sflag, size = 0x8, scoped, tag = 'scoped memory for tpu_custom_call.1']
    #allocation8 [shape = 'u8[8192]{0}', space=vmem, size = 0x2000, scoped, tag = 'output window, operand 0']
    %11 = vsyncpa [#allocation4], 0
    %s12 = scalar_lea.sflag [#allocation4], 1
    %13 = vsyncpa %s12, 0
    %14 = vsyncpa [#allocation7], 0
    %s15 = scalar_lea.sflag [#allocation7], 1
    %16 = vsyncpa %s15, 0
    %17 = vsyncpa [#allocation5], 0
    %s18 = scalar_lea.sflag [#allocation5], 1
    %19 = vsyncpa %s18, 0
    loop: start=0, step=1, limit=4
    $region2: #{tpu_custom_call.1} parent=1 // loop_pre_header
      _
    $region3: #{tpu_custom_call.1} parent=1 // loop_header
      %s21 = sphi 0, %s25
      %p22 = scmp.ge.s32.totalorder %s21, 4
      %s29 = sphi 0, %s29
      %s31 = sphi 0, %s29
      %s32 = sphi 0, %s31
      %s46 = sphi 0, %s32
      %s52 = sphi 0, %s54
      %s55 = sphi 0, %s52
      %s56 = sphi 0, %s55
      %s72 = sphi 0, %s56
      %s78 = sphi 0, %s80
      %s81 = sphi 0, %s78
      %s82 = sphi 0, %s81
      %s98 = sphi 0, %s82
      %s102 = sphi 0, %s102
      %s104 = sphi 0, %s102
      %s105 = sphi 0, %s104
      %s119 = sphi 0, %s105
      %s123 = sphi 0, %s123
      %s125 = sphi 0, %s123
      %s126 = sphi 0, %s125
      %s140 = sphi 0, %s126
      %s146 = sphi 0, %s148
      %s149 = sphi 0, %s146
      %s150 = sphi 0, %s149
      %s166 = sphi 0, %s150
    $region4: #{tpu_custom_call.1} parent=1 // loop_header_branch
      %24 = sbr.rel (%p22) target = $region8
    $region5: #{tpu_custom_call.1} parent=1 // loop_body
      %s26 = ssub.s32 %s21, 1
      %s27 = ssub.s32 %s21, 2
      %s28 = sadd.s32 %s21, 1
      %s30 = sadd.s32 %s29, 1
      %p33 = scmp.eq.s32.totalorder %s21, 1
      %p34 = scmp.ne.s32.totalorder %s29, %s31
      %p35 = scmp.eq.s32.totalorder %s21, 0
      %p36 = por %p34, %p35
      %p37 = scmp.ne.s32.totalorder %s29, %s31
      %p38 = scmp.eq.s32.totalorder %s26, 1
      %p39 = por %p37, %p38
      %p40 = scmp.ne.s32.totalorder %s31, %s32
      %p41 = scmp.eq.s32.totalorder %s26, 0
      %p42 = por %p40, %p41
      %p43 = scmp.ne.s32.totalorder %s31, %s32
      %p44 = scmp.eq.s32.totalorder %s27, 1
      %p45 = por %p43, %p44
      %p47 = scmp.ne.s32.totalorder %s32, %s46
      %p48 = scmp.eq.s32.totalorder %s27, 0
      %p49 = por %p47, %p48
      %s50 = ssub.s32 %s21, %s28
      %p51 = scmp.eq.s32.totalorder %s50, 0
      %s53 = sadd.s32 %s52, 1
      %s54 = scalar_select %p51, %s52, %s53
      %p57 = pneg %p51
      %p58 = scmp.eq.s32.totalorder %s21, 1
      %p59 = por %p57, %p58
      %p60 = scmp.ne.s32.totalorder %s52, %s55
      %p61 = scmp.eq.s32.totalorder %s21, 0
      %p62 = por %p60, %p61
      %p63 = scmp.ne.s32.totalorder %s52, %s55
      %p64 = scmp.eq.s32.totalorder %s26, 1
      %p65 = por %p63, %p64
      %p66 = scmp.ne.s32.totalorder %s55, %s56
      %p67 = scmp.eq.s32.totalorder %s26, 0
      %p68 = por %p66, %p67
      %p69 = scmp.ne.s32.totalorder %s55, %s56
      %p70 = scmp.eq.s32.totalorder %s27, 1
      %p71 = por %p69, %p70
      %p73 = scmp.ne.s32.totalorder %s56, %s72
      %p74 = scmp.eq.s32.totalorder %s27, 0
      %p75 = por %p73, %p74
      %s76 = ssub.s32 %s21, %s28
      %p77 = scmp.eq.s32.totalorder %s76, 0
      %s79 = sadd.s32 %s78, 1
      %s80 = scalar_select %p77, %s78, %s79
      %p83 = pneg %p77
      %p84 = scmp.eq.s32.totalorder %s21, 1
      %p85 = por %p83, %p84
      %p86 = scmp.ne.s32.totalorder %s78, %s81
      %p87 = scmp.eq.s32.totalorder %s21, 0
      %p88 = por %p86, %p87
      %p89 = scmp.ne.s32.totalorder %s78, %s81
      %p90 = scmp.eq.s32.totalorder %s26, 1
      %p91 = por %p89, %p90
      %p92 = scmp.ne.s32.totalorder %s81, %s82
      %p93 = scmp.eq.s32.totalorder %s26, 0
      %p94 = por %p92, %p93
      %p95 = scmp.ne.s32.totalorder %s81, %s82
      %p96 = scmp.eq.s32.totalorder %s27, 1
      %p97 = por %p95, %p96
      %p99 = scmp.ne.s32.totalorder %s82, %s98
      %p100 = scmp.eq.s32.totalorder %s27, 0
      %p101 = por %p99, %p100
      %s103 = sadd.s32 %s102, 1
      %p106 = scmp.eq.s32.totalorder %s21, 1
      %p107 = scmp.ne.s32.totalorder %s102, %s104
      %p108 = scmp.eq.s32.totalorder %s21, 0
      %p109 = por %p107, %p108
      %p110 = scmp.ne.s32.totalorder %s102, %s104
      %p111 = scmp.eq.s32.totalorder %s26, 1
      %p112 = por %p110, %p111
      %p113 = scmp.ne.s32.totalorder %s104, %s105
      %p114 = scmp.eq.s32.totalorder %s26, 0
      %p115 = por %p113, %p114
      %p116 = scmp.ne.s32.totalorder %s104, %s105
      %p117 = scmp.eq.s32.totalorder %s27, 1
      %p118 = por %p116, %p117
      %p120 = scmp.ne.s32.totalorder %s105, %s119
      %p121 = scmp.eq.s32.totalorder %s27, 0
      %p122 = por %p120, %p121
      %s124 = sadd.s32 %s123, 1
      %p127 = scmp.eq.s32.totalorder %s21, 1
      %p128 = scmp.ne.s32.totalorder %s123, %s125
      %p129 = scmp.eq.s32.totalorder %s21, 0
      %p130 = por %p128, %p129
      %p131 = scmp.ne.s32.totalorder %s123, %s125
      %p132 = scmp.eq.s32.totalorder %s26, 1
      %p133 = por %p131, %p132
      %p134 = scmp.ne.s32.totalorder %s125, %s126
      %p135 = scmp.eq.s32.totalorder %s26, 0
      %p136 = por %p134, %p135
      %p137 = scmp.ne.s32.totalorder %s125, %s126
      %p138 = scmp.eq.s32.totalorder %s27, 1
      %p139 = por %p137, %p138
      %p141 = scmp.ne.s32.totalorder %s126, %s140
      %p142 = scmp.eq.s32.totalorder %s27, 0
      %p143 = por %p141, %p142
      %s144 = ssub.s32 %s21, %s28
      %p145 = scmp.eq.s32.totalorder %s144, 0
      %s147 = sadd.s32 %s146, 1
      %s148 = scalar_select %p145, %s146, %s147
      %p151 = pneg %p145
      %p152 = scmp.eq.s32.totalorder %s21, 1
      %p153 = por %p151, %p152
      %p154 = scmp.ne.s32.totalorder %s146, %s149
      %p155 = scmp.eq.s32.totalorder %s21, 0
      %p156 = por %p154, %p155
      %p157 = scmp.ne.s32.totalorder %s146, %s149
      %p158 = scmp.eq.s32.totalorder %s26, 1
      %p159 = por %p157, %p158
      %p160 = scmp.ne.s32.totalorder %s149, %s150
      %p161 = scmp.eq.s32.totalorder %s26, 0
      %p162 = por %p160, %p161
      %p163 = scmp.ne.s32.totalorder %s149, %s150
      %p164 = scmp.eq.s32.totalorder %s27, 1
      %p165 = por %p163, %p164
      %p167 = scmp.ne.s32.totalorder %s150, %s166
      %p168 = scmp.eq.s32.totalorder %s27, 0
      %p169 = por %p167, %p168
      %p170 = scmp.le.s32.totalorder 1, %s21
      %p171 = scmp.lt.s32.totalorder %s21, 3
      %p172 = pnand %p170, %p171
      %p173 = pneg %p172
      // Predicated region
      $region9: #{tpu_custom_call.1} parent=5 // pred_check
        _
      $region10: #{tpu_custom_call.1} parent=5 // pred_check_branch
        %175 = sbr.rel (%p172) target = $region12
      $region11: #{tpu_custom_call.1} parent=5 // pred_region
        %s176 = ssub.s32 %s21, 1
        // Predicated region
        $region13: #{tpu_custom_call.1} parent=11 // pred_check
          %p177 = pneg %p42
        $region14: #{tpu_custom_call.1} parent=11 // pred_check_branch
          %179 = sbr.rel (%p177) target = $region16
        $region15: #{tpu_custom_call.1} parent=11 // pred_region
          _
        $region16: #{tpu_custom_call.1} parent=11 // pred_fallthru
          _
        // Predicated region
        $region17: #{tpu_custom_call.1} parent=11 // pred_check
          %p180 = pneg %p115
        $region18: #{tpu_custom_call.1} parent=11 // pred_check_branch
          %182 = sbr.rel (%p180) target = $region20
        $region19: #{tpu_custom_call.1} parent=11 // pred_region
          _
        $region20: #{tpu_custom_call.1} parent=11 // pred_fallthru
          _
        // Predicated region
        $region21: #{tpu_custom_call.1} parent=11 // pred_check
          %p183 = pneg %p136
        $region22: #{tpu_custom_call.1} parent=11 // pred_check_branch
          %185 = sbr.rel (%p183) target = $region24
        $region23: #{tpu_custom_call.1} parent=11 // pred_region
          _
        $region24: #{tpu_custom_call.1} parent=11 // pred_fallthru
          _
      $region12: #{tpu_custom_call.1} parent=5 // pred_fallthru
        _
      %p186 = scmp.lt.s32.totalorder %s21, 2
      // Predicated region
      $region25: #{tpu_custom_call.1} parent=5 // pred_check
        %p187 = pneg %p186
      $region26: #{tpu_custom_call.1} parent=5 // pred_check_branch
        %189 = sbr.rel (%p187) target = $region28
      $region27: #{tpu_custom_call.1} parent=5 // pred_region
        // Predicated region
        $region29: #{tpu_custom_call.1} parent=27 // pred_check
          %p190 = pneg %p62
        $region30: #{tpu_custom_call.1} parent=27 // pred_check_branch
          %192 = sbr.rel (%p190) target = $region32
        $region31: #{tpu_custom_call.1} parent=27 // pred_region
          %s193 = sand.u32 %s52, 1
          %s194 = scalar_lea.sflag [#allocation4], %s193
          %s195 = sand.u32 %s52, 1
          %s196 = smul.addr %s195, 8
          %s197 = scalar_lea.vmem [#allocation3], %s196
          %s199 = ssub.s32 128, 128
          %200 = vsyncadd %s194, %s199
          %s201 = smul.addr %s21, 128
          %s202 = scalar_lea.hbm %s1, %s201
          %s204 = sshll.u32 %s197, 4
          %s205 = int_to_ptr.vmem [resolvable:$true] %s204
          %207 = dma.hbm_to_vmem [thread:$0]  %s202, 128, %s205, %s194
        $region32: #{tpu_custom_call.1} parent=27 // pred_fallthru
          _
        // Predicated region
        $region33: #{tpu_custom_call.1} parent=27 // pred_check
          %p208 = pneg %p88
        $region34: #{tpu_custom_call.1} parent=27 // pred_check_branch
          %210 = sbr.rel (%p208) target = $region36
        $region35: #{tpu_custom_call.1} parent=27 // pred_region
          %s211 = sand.u32 %s78, 1
          %s212 = scalar_lea.sflag [#allocation7], %s211
          %s213 = sand.u32 %s78, 1
          %s214 = smul.addr %s213, 8
          %s215 = scalar_lea.vmem [#allocation6], %s214
          %s217 = ssub.s32 128, 128
          %218 = vsyncadd %s212, %s217
          %s219 = smul.addr %s21, 128
          %s220 = scalar_lea.hbm %s2, %s219
          %s222 = sshll.u32 %s215, 4
          %s223 = int_to_ptr.vmem [resolvable:$true] %s222
          %225 = dma.hbm_to_vmem [thread:$0]  %s220, 128, %s223, %s212
        $region36: #{tpu_custom_call.1} parent=27 // pred_fallthru
          _
      $region28: #{tpu_custom_call.1} parent=5 // pred_fallthru
        _
      %p226 = scmp.le.s32.totalorder 1, %s21
      %p227 = scmp.lt.s32.totalorder %s21, 3
      %p228 = pnand %p226, %p227
      %p229 = pneg %p228
      // Predicated region
      $region37: #{tpu_custom_call.1} parent=5 // pred_check
        _
      $region38: #{tpu_custom_call.1} parent=5 // pred_check_branch
        %231 = sbr.rel (%p228) target = $region40
      $region39: #{tpu_custom_call.1} parent=5 // pred_region
        %s232 = ssub.s32 %s21, 1
        %s233 = sand.u32 %s55, 1
        %s234 = scalar_lea.sflag [#allocation4], %s233
        %s235 = sand.u32 %s55, 1
        %s236 = smul.addr %s235, 8
        %s237 = scalar_lea.vmem [#allocation3], %s236
        // Predicated region
        $region41: #{tpu_custom_call.1} parent=39 // pred_check
          %p238 = pneg %p68
        $region42: #{tpu_custom_call.1} parent=39 // pred_check_branch
          %240 = sbr.rel (%p238) target = $region44
        $region43: #{tpu_custom_call.1} parent=39 // pred_region
          %241 = dma.done %s234, 128
        $region44: #{tpu_custom_call.1} parent=39 // pred_fallthru
          _
        %s242 = sand.u32 %s81, 1
        %s243 = scalar_lea.sflag [#allocation7], %s242
        %s244 = sand.u32 %s81, 1
        %s245 = smul.addr %s244, 8
        %s246 = scalar_lea.vmem [#allocation6], %s245
        // Predicated region
        $region45: #{tpu_custom_call.1} parent=39 // pred_check
          %p247 = pneg %p94
        $region46: #{tpu_custom_call.1} parent=39 // pred_check_branch
          %249 = sbr.rel (%p247) target = $region48
        $region47: #{tpu_custom_call.1} parent=39 // pred_region
          %250 = dma.done %s243, 128
        $region48: #{tpu_custom_call.1} parent=39 // pred_fallthru
          _
        %p251 = pneg %p42
        %p252 = pneg %p39
        %s253 = sand.u32 %s55, 1
        %s254 = scalar_lea.sflag [#allocation4], %s253
        %s255 = sand.u32 %s55, 1
        %s256 = smul.addr %s255, 8
        %s257 = scalar_lea.vmem [#allocation3], %s256
        %p258 = pneg %p68
        %p259 = pneg %p65
        %s260 = sand.u32 %s81, 1
        %s261 = scalar_lea.sflag [#allocation7], %s260
        %s262 = sand.u32 %s81, 1
        %s263 = smul.addr %s262, 8
        %s264 = scalar_lea.vmem [#allocation6], %s263
        %p265 = pneg %p94
        %p266 = pneg %p91
        %p267 = pneg %p115
        %p268 = pneg %p112
        %p269 = pneg %p136
        %p270 = pneg %p133
        %p271 = pneg %p162
        %p272 = pneg %p159
        %s273 = sand.u32 %s149, 1
        %s274 = scalar_lea.sflag [#allocation5], %s273
        %s275 = sand.u32 %s149, 1
        %s276 = smul.addr %s275, 8
        %s277 = scalar_lea.vmem [#allocation8], %s276
        %s278 = sld [smem:[#allocation2]]
        %v279 = vld [vmem:[%s237] sm:$0xff]
        %v280 = vld [vmem:[%s246] sm:$0xff]
        %v281 = vstv %s278
        %v282 = vmul.f32 %v281, %v280
        %v283 = vadd.f32 %v279, %v282
        %284 = vadd.xlane.f32.xlu0 %v283
        %v285 = vpop.xlane.xlu0 %284
        %v286 = vmul.f32 %v285, 0.0078125
        %v287 = vmul.f32 %v283, %v283
        %288 = vadd.xlane.f32.xlu0 %v287
        %v289 = vpop.xlane.xlu0 %288
        %v290 = vmul.f32 %v289, 0.0078125
        %v291 = vmul.f32 %v286, %v286
        %v292 = vsub.f32 %v290, %v291
        %v293 = vmax.f32 %v292, 0.0
        %v294 = vadd.f32 %v293, 1e-05
        %v295 = vrsqrt.pop %v294
        %v296 = vsub.f32 %v283, %v286
        %v297 = vmul.f32 %v296, %v295
        %v298 = vld [vmem:[%s3] sm:$0x1]
        %v300 = vlaneseq
        %v301 = vshrl.u32 %v300, 7
        %v302 = vsub.s32 0, %v301
        %v303 = vrot.slane %v298, %v302
        %v305 = vmul.f32 %v297, %v303
        %v306 = vld [vmem:[%s4] sm:$0x1]
        %v308 = vlaneseq
        %v309 = vshrl.u32 %v308, 7
        %v310 = vsub.s32 0, %v309
        %v311 = vrot.slane %v306, %v310
        %v313 = vadd.f32 %v305, %v311
        %314 = vst [vmem:[%s277] sm:$0xff] %v313
        %s315 = sand.u32 %s149, 1
        %s316 = scalar_lea.sflag [#allocation5], %s315
        %s317 = sand.u32 %s149, 1
        %s318 = smul.addr %s317, 8
        %s319 = scalar_lea.vmem [#allocation8], %s318
        // Predicated region
        $region49: #{tpu_custom_call.1} parent=39 // pred_check
          %p320 = pneg %p159
        $region50: #{tpu_custom_call.1} parent=39 // pred_check_branch
          %322 = sbr.rel (%p320) target = $region52
        $region51: #{tpu_custom_call.1} parent=39 // pred_region
          %s324 = ssub.s32 128, 128
          %325 = vsyncadd %s316, %s324
          %s326 = smul.addr %s26, 128
          %s327 = scalar_lea.hbm %s5, %s326
          %s329 = sshll.u32 %s319, 4
          %s330 = int_to_ptr.vmem [resolvable:$true] %s329
          %332 = dma.vmem_to_hbm [thread:$0]  %s330, 128, %s327, %s316
        $region52: #{tpu_custom_call.1} parent=39 // pred_fallthru
          _
      $region40: #{tpu_custom_call.1} parent=5 // pred_fallthru
        _
      %p333 = scmp.le.s32.totalorder 2, %s21
      // Predicated region
      $region53: #{tpu_custom_call.1} parent=5 // pred_check
        %p334 = pneg %p333
      $region54: #{tpu_custom_call.1} parent=5 // pred_check_branch
        %336 = sbr.rel (%p334) target = $region56
      $region55: #{tpu_custom_call.1} parent=5 // pred_region
        %s337 = ssub.s32 %s21, 2
        // Predicated region
        $region57: #{tpu_custom_call.1} parent=55 // pred_check
          %p338 = pneg %p165
        $region58: #{tpu_custom_call.1} parent=55 // pred_check_branch
          %340 = sbr.rel (%p338) target = $region60
        $region59: #{tpu_custom_call.1} parent=55 // pred_region
          %s341 = sand.u32 %s150, 1
          %s342 = scalar_lea.sflag [#allocation5], %s341
          %s343 = sand.u32 %s150, 1
          %s344 = smul.addr %s343, 8
          %s345 = scalar_lea.vmem [#allocation8], %s344
          %346 = dma.done %s342, 128
        $region60: #{tpu_custom_call.1} parent=55 // pred_fallthru
          _
      $region56: #{tpu_custom_call.1} parent=5 // pred_fallthru
        _
    $region6: #{tpu_custom_call.1} parent=1 // loop_footer
      %s25 = sadd.s32 1, %s21
    $region7: #{tpu_custom_call.1} parent=1 // loop_footer_branch
      %20 = sbr.rel target = $region3
    $region8: #{tpu_custom_call.1} parent=1 // loop_exit
      _
    %347 = vsyncpa [#allocation4], 1
    %s348 = scalar_lea.sflag [#allocation4], 1
    %349 = vsyncpa %s348, 1
    %350 = vsyncpa [#allocation7], 1
    %s351 = scalar_lea.sflag [#allocation7], 1
    %352 = vsyncpa %s351, 1
    %353 = vsyncpa [#allocation5], 1
    %s354 = scalar_lea.sflag [#allocation5], 1
    %355 = vsyncpa %s354, 1

</llo_original>
